<compile_context>
chip_gen: v6e
topology: v6e:2x2x1
jax: 0.10.0
libtpu: 0.0.40
codegen_flags: <defaults>
</compile_context>

<pallas_src>
import functools
import math

import jax
import jax.numpy as jnp
from jax.experimental import pallas as pl
from jax.experimental.pallas import tpu as pltpu


# ---------------------------------------------------------------------------
# Buffer setup (mirrors the torch __init__ exactly; pe is a registered buffer)
# ---------------------------------------------------------------------------
def make_positional_table(d_model: int, max_len: int = 5000) -> jnp.ndarray:
    """Returns pe with shape (max_len, 1, d_model), float32 (same as torch buffer)."""
    position = jnp.arange(max_len, dtype=jnp.float32)[:, None]              # (max_len, 1)
    div_term = jnp.exp(
        jnp.arange(0, d_model, 2, dtype=jnp.float32) * (-math.log(10000.0) / d_model)
    )                                                                        # (d_model/2,)
    pe = jnp.zeros((max_len, d_model), dtype=jnp.float32)
    pe = pe.at[:, 0::2].set(jnp.sin(position * div_term))
    pe = pe.at[:, 1::2].set(jnp.cos(position * div_term))
    return pe[:, None, :]                                                    # (max_len, 1, d_model)


# ---------------------------------------------------------------------------
# Kernels
# ---------------------------------------------------------------------------
def _pe_add_kernel(x_ref, pe_ref, o_ref):
    """Eval-mode forward: out = x + pe[:S] (dropout is identity in eval)."""
    # x: (ts, B, D); pe: (ts, D) broadcast over batch (cheap sublane broadcast).
    o_ref[...] = (x_ref[...] + pe_ref[...][:, None, :]).astype(o_ref.dtype)


def _pe_add_dropout_kernel(x_ref, pe_ref, bits_ref, o_ref, *, threshold, scale):
    """Training-mode forward: out = dropout(x + pe[:S], p) with inverted scaling.

    bits_ref holds int32 random bits; keep iff bits >= threshold, where the
    threshold is chosen so P(keep) = 1 - p (pure integer compare, no casts).
    """
    y = x_ref[...] + pe_ref[...][:, None, :]            # (ts, B, D) f32
    keep = bits_ref[...] >= threshold
    o_ref[...] = jnp.where(keep, y * scale, 0.0).astype(o_ref.dtype)


# ---------------------------------------------------------------------------
# Tiling / wrapper
# ---------------------------------------------------------------------------
_VMEM_WORKING_SET_BYTES = 32 * 1024 * 1024   # double-buffered tile budget (safe on v5e/v6e/v7x)
_VMEM_LIMIT_BYTES = 48 * 1024 * 1024         # scoped VMEM limit; headroom under v7x's 64 MiB


def _choose_block_s(S: int, row_bytes: int) -> int:
    """Pick the largest seq-tile whose double-buffered working set fits the budget."""
    bs = int(_VMEM_WORKING_SET_BYTES // max(2 * row_bytes, 1))
    bs = min(max(bs, 1), S)
    if bs < S:
        # pe block is 2-D (block_s, D): its sublane dim must be a multiple of 8.
        bs = max(8, (bs // 8) * 8)
        bs = min(bs, S)
    return bs


def positional_encoding_forward(x, pe_table, *, p=0.1, training=False, rng_key=None):
    """x: (S, B, D), pe_table: (max_len, 1, D). Returns (S, B, D)."""
    S, B, D = x.shape
    pe = pe_table[:S, 0, :].astype(jnp.float32)          # (S, D) slice used by forward
    itemsize = jnp.dtype(x.dtype).itemsize

    use_dropout = training and p > 0.0

    # Per-sequence-row bytes across all streamed arrays (x, out, [bits], pe).
    if use_dropout:
        row_bytes = (2 * itemsize + 4) * B * D + 4 * D
    else:
        row_bytes = 2 * itemsize * B * D + 4 * D
    block_s = _choose_block_s(S, row_bytes)
    grid = (pl.cdiv(S, block_s),)                        # ragged tail handled by Pallas

    x_spec = pl.BlockSpec((block_s, B, D), lambda i: (i, 0, 0))
    pe_spec = pl.BlockSpec((block_s, D), lambda i: (i, 0))
    out_spec = pl.BlockSpec((block_s, B, D), lambda i: (i, 0, 0))
    out_shape = jax.ShapeDtypeStruct(x.shape, x.dtype)
    cparams = pltpu.CompilerParams(
        dimension_semantics=("parallel",),
        vmem_limit_bytes=_VMEM_LIMIT_BYTES,
    )

    if not use_dropout:
        return pl.pallas_call(
            _pe_add_kernel,
            out_shape=out_shape,
            grid_spec=pltpu.PrefetchScalarGridSpec(
                num_scalar_prefetch=0,
                grid=grid,
                in_specs=[x_spec, pe_spec],
                out_specs=out_spec,
            ),
            compiler_params=cparams,
        )(x, pe)

    assert 0.0 < p < 1.0, "dropout prob must be in [0, 1)"
    if rng_key is None:
        rng_key = jax.random.PRNGKey(0)

    # TODO(synk): use on-chip pltpu.prng_seed / prng_random_bits to avoid the
    # extra HBM read of the bits tensor; kept host-side here because the TPU
    # PRNG primitives have no CPU/interpret lowering in this environment.
    bits_u32 = jax.random.bits(rng_key, (S, B, D), dtype=jnp.uint32)
    bits = jax.lax.bitcast_convert_type(bits_u32, jnp.int32)

    # keep iff bits >= threshold  ==>  P(keep) = 1 - p  (signed 32-bit domain)
    threshold = int(round(p * (1 << 32))) - (1 << 31)
    scale = 1.0 / (1.0 - p)

    bits_spec = pl.BlockSpec((block_s, B, D), lambda i: (i, 0, 0))
    kernel = functools.partial(_pe_add_dropout_kernel, threshold=threshold, scale=scale)
    return pl.pallas_call(
        kernel,
        out_shape=out_shape,
        grid_spec=pltpu.PrefetchScalarGridSpec(
            num_scalar_prefetch=0,
            grid=grid,
            in_specs=[x_spec, pe_spec, bits_spec],
            out_specs=out_spec,
        ),
        compiler_params=cparams,
    )(x, pe, bits)


# ---------------------------------------------------------------------------
# Demo / self-test
# ---------------------------------------------------------------------------
if __name__ == "__main__":
    # Small but lane/sublane-dense shapes: seq=8, batch=8, d_model=128.
    S, B, D = 8, 8, 128
    MAX_LEN = 64

    key = jax.random.PRNGKey(0)
    kx, kd = jax.random.split(key)
    x = jax.random.normal(kx, (S, B, D), dtype=jnp.float32)
    pe_table = make_positional_table(D, max_len=MAX_LEN)

    # Eval-mode forward (dropout == identity): deterministic, checked vs reference.
    out = positional_encoding_forward(x, pe_table, p=0.1, training=False)
    out = jax.block_until_ready(out)

    ref = x + pe_table[:S, :]          # broadcasts (S,1,D) over batch, exactly like torch
    assert out.shape == (S, B, D)
    assert jnp.allclose(out, ref, atol=1e-6, rtol=1e-6)

    # Training-mode forward: kept entries equal ref/(1-p), dropped entries are 0,
    # keep fraction ~ 1 - p.
    p = 0.1
    out_train = positional_encoding_forward(x, pe_table, p=p, training=True, rng_key=kd)
    out_train = jax.block_until_ready(out_train)
    assert out_train.shape == (S, B, D)

    kept = out_train != 0.0
    assert jnp.allclose(
        jnp.where(kept, out_train, 0.0),
        jnp.where(kept, ref / (1.0 - p), 0.0),
        atol=1e-5, rtol=1e-5,
    )
    keep_frac = float(jnp.mean(kept.astype(jnp.float32)))
    assert 0.85 < keep_frac < 0.95, f"unexpected keep fraction {keep_frac}"

    print("KERNEL_OK")
</pallas_src>

<mosaic_0001>
module attributes {stable_mosaic.version = 11 : i64} {
  func.func @_pe_add_kernel(%arg0: i32, %arg1: memref<8x8x128xf32, #tpu.memory_space<vmem>>, %arg2: memref<8x128xf32, #tpu.memory_space<vmem>>, %arg3: memref<8x8x128xf32, #tpu.memory_space<vmem>>) attributes {dimension_semantics = [#tpu.dimension_semantics<parallel>], iteration_bounds = array<i64: 1>, scalar_prefetch = 0 : i64, scratch_operands = 0 : i64, tpu.core_type = #tpu.core_type<tc>, window_params = [{transform_indices = @transform_0, window_bounds = array<i64: 8, 8, 128>}, {transform_indices = @transform_1, window_bounds = array<i64: 8, 128>}, {transform_indices = @transform_2, window_bounds = array<i64: 8, 8, 128>}]} {
    %c0 = arith.constant 0 : index
    %c0_0 = arith.constant 0 : index
    %c0_1 = arith.constant 0 : index
    %0 = vector.load %arg1[%c0, %c0_0, %c0_1] : memref<8x8x128xf32, #tpu.memory_space<vmem>>, vector<8x8x128xf32>
    %c0_2 = arith.constant 0 : index
    %c0_3 = arith.constant 0 : index
    %1 = vector.load %arg2[%c0_2, %c0_3] : memref<8x128xf32, #tpu.memory_space<vmem>>, vector<8x128xf32>
    %2 = vector.shape_cast %1 : vector<8x128xf32> to vector<8x1x128xf32>
    %3 = vector.broadcast %2 : vector<8x1x128xf32> to vector<8x8x128xf32>
    %4 = arith.addf %0, %3 : vector<8x8x128xf32>
    %c0_4 = arith.constant 0 : index
    %c0_5 = arith.constant 0 : index
    %c0_6 = arith.constant 0 : index
    %5 = vector.load %arg3[%c0_4, %c0_5, %c0_6] : memref<8x8x128xf32, #tpu.memory_space<vmem>>, vector<8x8x128xf32>
    tpu.vector_store %arg3[%c0_4, %c0_5, %c0_6], %4 {strides = array<i32>} : memref<8x8x128xf32, #tpu.memory_space<vmem>>, vector<8x8x128xf32>,
    return
  }
  func.func @transform_0(%arg0: i32) -> (i32, i32, i32) {
    %c0_i32 = arith.constant 0 : i32
    %c0_i32_0 = arith.constant 0 : i32
    %c0_i32_1 = arith.constant 0 : i32
    return %arg0, %c0_i32, %c0_i32_0 : i32, i32, i32
  }
  func.func @transform_1(%arg0: i32) -> (i32, i32) {
    %c0_i32 = arith.constant 0 : i32
    %c0_i32_0 = arith.constant 0 : i32
    return %arg0, %c0_i32 : i32, i32
  }
  func.func @transform_2(%arg0: i32) -> (i32, i32, i32) {
    %c0_i32 = arith.constant 0 : i32
    %c0_i32_0 = arith.constant 0 : i32
    %c0_i32_1 = arith.constant 0 : i32
    return %arg0, %c0_i32, %c0_i32_0 : i32, i32, i32
  }
}

</mosaic_0001>

<llo_original>
// kernel: tpu_custom_call.1
$region0: #{tpu_custom_call.1}
  #allocation0 [shape = 'u32[]', space=smem, size = 0x4, offset = 0x4, fixed_abs, tag = 'smem constant byte address 0x4 - core index']
  #allocation1 [shape = 'u32[144,128]{1,0:T(1,128)}', space=vmem, size = 0x12000, scoped, tag = 'internal scratch']
  %s0 = inlined_call_operand.hbm [shape: f32[8,8,128], index: 0, kind: input, shape index: {}]
  %s1 = inlined_call_operand.hbm [shape: f32[8,128], index: 1, kind: input, shape index: {}]
  %s2 = inlined_call_operand.hbm [shape: f32[8,8,128], index: 2, kind: output, shape index: {}]
  %s3 = sld [smem:[#allocation0]]
  $region26: #{tpu_custom_call.1} parent=0
    _
  %s5 = ssub.s32 1, %s3
  %s6 = scalar_select 0, %s5, %s3
  $region1: #{tpu_custom_call.1} parent=0
    #allocation2 [shape = 'u8[32768]{0}', space=vmem, size = 0x8000, scoped, tag = 'input window, operand 0, single buffered']
    #allocation3 [shape = 's32[1]{0}', space=sflag, size = 0x4, scoped, tag = 'scoped memory for tpu_custom_call.1']
    #allocation4 [shape = 's32[1]{0}', space=sflag, size = 0x4, scoped, tag = 'scoped memory for tpu_custom_call.1']
    #allocation5 [shape = 'u8[4096]{0}', space=vmem, size = 0x1000, scoped, tag = 'input window, operand 1, single buffered']
    #allocation6 [shape = 's32[1]{0}', space=sflag, size = 0x4, scoped, tag = 'scoped memory for tpu_custom_call.1']
    #allocation7 [shape = 'u8[32768]{0}', space=vmem, size = 0x8000, scoped, tag = 'output window, operand 0, single buffered']
    %7 = vsyncpa [#allocation3], 0
    %8 = vsyncpa [#allocation6], 0
    %9 = vsyncpa [#allocation4], 0
    // Predicated region
    $region2: #{tpu_custom_call.1} parent=1 // pred_check
      _
    $region3: #{tpu_custom_call.1} parent=1 // pred_check_branch
      %11 = sbr.rel (0) target = $region5
    $region4: #{tpu_custom_call.1} parent=1 // pred_region
      %s13 = ssub.s32 1024, 1024
      %14 = vsyncadd [#allocation3], %s13
      %s15 = sshll.u32 [#allocation2], 4
      %s16 = int_to_ptr.vmem [resolvable:$true] %s15
      %21 = dma.hbm_to_vmem [thread:$0]  %s0, 1024, %s16, [#allocation3], 128, 128, 8
    $region5: #{tpu_custom_call.1} parent=1 // pred_fallthru
      _
    // Predicated region
    $region6: #{tpu_custom_call.1} parent=1 // pred_check
      _
    $region7: #{tpu_custom_call.1} parent=1 // pred_check_branch
      %23 = sbr.rel (0) target = $region9
    $region8: #{tpu_custom_call.1} parent=1 // pred_region
      %s25 = ssub.s32 128, 128
      %26 = vsyncadd [#allocation6], %s25
      %s28 = sshll.u32 [#allocation5], 4
      %s29 = int_to_ptr.vmem [resolvable:$true] %s28
      %31 = dma.hbm_to_vmem [thread:$0]  %s1, 128, %s29, [#allocation6]
    $region9: #{tpu_custom_call.1} parent=1 // pred_fallthru
      _
    // Predicated region
    $region10: #{tpu_custom_call.1} parent=1 // pred_check
      _
    $region11: #{tpu_custom_call.1} parent=1 // pred_check_branch
      %33 = sbr.rel (0) target = $region13
    $region12: #{tpu_custom_call.1} parent=1 // pred_region
      %34 = dma.done [#allocation3], 1024
    $region13: #{tpu_custom_call.1} parent=1 // pred_fallthru
      _
    // Predicated region
    $region14: #{tpu_custom_call.1} parent=1 // pred_check
      _
    $region15: #{tpu_custom_call.1} parent=1 // pred_check_branch
      %36 = sbr.rel (0) target = $region17
    $region16: #{tpu_custom_call.1} parent=1 // pred_region
      %37 = dma.done [#allocation6], 128
    $region17: #{tpu_custom_call.1} parent=1 // pred_fallthru
      _
    %v38 = vld [vmem:[#allocation2] sm:$0xff]
    %v39 = vld [vmem:[#allocation2 + $0x8] sm:$0xff]
    %v40 = vld [vmem:[#allocation2 + $0x10] sm:$0xff]
    %v41 = vld [vmem:[#allocation2 + $0x18] sm:$0xff]
    %v42 = vld [vmem:[#allocation2 + $0x20] sm:$0xff]
    %v43 = vld [vmem:[#allocation2 + $0x28] sm:$0xff]
    %v44 = vld [vmem:[#allocation2 + $0x30] sm:$0xff]
    %v45 = vld [vmem:[#allocation2 + $0x38] sm:$0xff]
    %v46 = vld [vmem:[#allocation5] sm:$0xff]
    %v48 = vcombine.high %v46, %v46
    %v50 = vunpack.c.l.s4 1966171168
    %v51 = vunpack.c.0.s8 %v50
    %v52 = vlaneseq
    %v53 = vshrl.u32 %v52, 7
    %v54 = vsub.s32 %v51, %v53
    %v55 = vrot.slane %v46, %v54
    %v57 = vunpack.c.l.s4 1966171168
    %v58 = vunpack.c.0.s8 %v57
    %v59 = vlaneseq
    %v60 = vshrl.u32 %v59, 7
    %v61 = vsub.s32 %v58, %v60
    %v62 = vrot.slane %v48, %v61
    %v63 = vcombine.high %v55, %v55
    %v64 = vcombine.high %v62, %v62
    %v66 = vunpack.c.l.s4 1966171168
    %v67 = vunpack.c.0.s8 %v66
    %v68 = vlaneseq
    %v69 = vshrl.u32 %v68, 7
    %v70 = vsub.s32 %v67, %v69
    %v71 = vrot.slane %v55, %v70
    %v73 = vunpack.c.l.s4 1966171168
    %v74 = vunpack.c.0.s8 %v73
    %v75 = vlaneseq
    %v76 = vshrl.u32 %v75, 7
    %v77 = vsub.s32 %v74, %v76
    %v78 = vrot.slane %v62, %v77
    %v80 = vunpack.c.l.s4 1966171168
    %v81 = vunpack.c.0.s8 %v80
    %v82 = vlaneseq
    %v83 = vshrl.u32 %v82, 7
    %v84 = vsub.s32 %v81, %v83
    %v85 = vrot.slane %v63, %v84
    %v87 = vunpack.c.l.s4 1966171168
    %v88 = vunpack.c.0.s8 %v87
    %v89 = vlaneseq
    %v90 = vshrl.u32 %v89, 7
    %v91 = vsub.s32 %v88, %v90
    %v92 = vrot.slane %v64, %v91
    %v93 = vcombine.high %v71, %v71
    %v94 = vcombine.high %v78, %v78
    %v95 = vcombine.high %v85, %v85
    %v96 = vcombine.high %v92, %v92
    %v97 = vlaneseq
    %v98 = vshrl.u32 %v97, 7
    %v99 = vsub.s32 0, %v98
    %v100 = vrot.slane %v71, %v99
    %v101 = vlaneseq
    %v102 = vshrl.u32 %v101, 7
    %v103 = vsub.s32 0, %v102
    %v104 = vrot.slane %v85, %v103
    %v105 = vlaneseq
    %v106 = vshrl.u32 %v105, 7
    %v107 = vsub.s32 0, %v106
    %v108 = vrot.slane %v93, %v107
    %v109 = vlaneseq
    %v110 = vshrl.u32 %v109, 7
    %v111 = vsub.s32 0, %v110
    %v112 = vrot.slane %v95, %v111
    %v113 = vlaneseq
    %v114 = vshrl.u32 %v113, 7
    %v115 = vsub.s32 0, %v114
    %v116 = vrot.slane %v78, %v115
    %v117 = vlaneseq
    %v118 = vshrl.u32 %v117, 7
    %v119 = vsub.s32 0, %v118
    %v120 = vrot.slane %v92, %v119
    %v121 = vlaneseq
    %v122 = vshrl.u32 %v121, 7
    %v123 = vsub.s32 0, %v122
    %v124 = vrot.slane %v94, %v123
    %v125 = vlaneseq
    %v126 = vshrl.u32 %v125, 7
    %v127 = vsub.s32 0, %v126
    %v128 = vrot.slane %v96, %v127
    %v137 = vadd.f32 %v38, %v100
    %v138 = vadd.f32 %v39, %v104
    %v139 = vadd.f32 %v40, %v108
    %v140 = vadd.f32 %v41, %v112
    %v141 = vadd.f32 %v42, %v116
    %v142 = vadd.f32 %v43, %v120
    %v143 = vadd.f32 %v44, %v124
    %v144 = vadd.f32 %v45, %v128
    %145 = vst [vmem:[#allocation7] sm:$0xff] %v137
    %146 = vst [vmem:[#allocation7 + $0x8] sm:$0xff] %v138
    %147 = vst [vmem:[#allocation7 + $0x10] sm:$0xff] %v139
    %148 = vst [vmem:[#allocation7 + $0x18] sm:$0xff] %v140
    %149 = vst [vmem:[#allocation7 + $0x20] sm:$0xff] %v141
    %150 = vst [vmem:[#allocation7 + $0x28] sm:$0xff] %v142
    %151 = vst [vmem:[#allocation7 + $0x30] sm:$0xff] %v143
    %152 = vst [vmem:[#allocation7 + $0x38] sm:$0xff] %v144
    // Predicated region
    $region18: #{tpu_custom_call.1} parent=1 // pred_check
      _
    $region19: #{tpu_custom_call.1} parent=1 // pred_check_branch
      %154 = sbr.rel (0) target = $region21
    $region20: #{tpu_custom_call.1} parent=1 // pred_region
      %s156 = ssub.s32 1024, 1024
      %157 = vsyncadd [#allocation4], %s156
      %s158 = sshll.u32 [#allocation7], 4
      %s159 = int_to_ptr.vmem [resolvable:$true] %s158
      %164 = dma.vmem_to_hbm [thread:$0]  %s159, 1024, %s2, [#allocation4], 128, 128, 8
    $region21: #{tpu_custom_call.1} parent=1 // pred_fallthru
      _
    // Predicated region
    $region22: #{tpu_custom_call.1} parent=1 // pred_check
      _
    $region23: #{tpu_custom_call.1} parent=1 // pred_check_branch
      %166 = sbr.rel (0) target = $region25
    $region24: #{tpu_custom_call.1} parent=1 // pred_region
      %167 = dma.done [#allocation4], 1024
    $region25: #{tpu_custom_call.1} parent=1 // pred_fallthru
      _
    %168 = vsyncpa [#allocation3], 1
    %169 = vsyncpa [#allocation6], 1
    %170 = vsyncpa [#allocation4], 1

</llo_original>
